<compile_context>
chip_gen: v7x
topology: tpu7x:2x2x1
jax: 0.10.0
libtpu: 0.0.40
codegen_flags: <defaults>
</compile_context>

<pallas_src>
import jax
import jax.numpy as jnp
from jax.experimental import pallas as pl
from jax.experimental.pallas import tpu as pltpu


def _round_up(x, m):
    return (x + m - 1) // m * m


def _gated_combination_kernel(
    x1_ref, x2_ref, x3_ref, x4_ref,
    wa_ref, ba_ref, wb_ref, bb_ref,
    fcw_ref, fcb_ref,
    out_ref,
):
    x1 = x1_ref[...]
    x2 = x2_ref[...]
    x3 = x3_ref[...]
    x4 = x4_ref[...]

    # Gate matmuls on the MXU in bf16.  Weights are bf16 in torch [out, in]
    # layout; contract the 'in' dim of both operands (== x @ W^T, no transpose).
    dn = (((1,), (1,)), ((), ()))
    z1 = jax.lax.dot_general(
        x1.astype(jnp.bfloat16), wa_ref[...], dn,
        preferred_element_type=jnp.float32) + ba_ref[...]
    z2 = jax.lax.dot_general(
        x3.astype(jnp.bfloat16), wb_ref[...], dn,
        preferred_element_type=jnp.float32) + bb_ref[...]
    g1 = jax.nn.sigmoid(z1)
    g2 = jax.nn.sigmoid(z2)

    # Blend (f32): x1*g1 + x2*(1-g1) == x2 + g1*(x1-x2)  (one fewer VPU mul).
    a = x2 + g1 * (x1 - x2)
    b = x4 + g2 * (x3 - x4)

    # Cosine similarity along features with torch eps semantics via clamped rsqrt:
    #   max(sqrt(s), eps) == sqrt(max(s, eps^2))
    eps2 = jnp.float32(1e-16)  # (1e-8)^2
    dot_ab = jnp.sum(a * b, axis=1, keepdims=True)
    ss_a = jnp.maximum(jnp.sum(a * a, axis=1, keepdims=True), eps2)
    ss_b = jnp.maximum(jnp.sum(b * b, axis=1, keepdims=True), eps2)
    cos = dot_ab * jax.lax.rsqrt(ss_a) * jax.lax.rsqrt(ss_b)

    # fc: Linear(1, 1) then sigmoid.  Scalars come from SMEM.
    fc_w = fcw_ref[0, 0]
    fc_b = fcb_ref[0, 0]
    out_ref[...] = jax.nn.sigmoid(fc_w * cos + fc_b).astype(out_ref.dtype)


def prepare_params(wa, ba, wb, bb, fc_w, fc_b):
    """One-time parameter preparation (call at init, NOT per forward pass):
    casts gate weights to bf16 (keeps torch [out, in] layout -> no transpose),
    reshapes biases / fc scalars for the kernel."""
    D = wa.shape[0]
    return (
        jnp.asarray(wa, jnp.bfloat16),
        jnp.asarray(ba, jnp.float32).reshape(1, D),
        jnp.asarray(wb, jnp.bfloat16),
        jnp.asarray(bb, jnp.float32).reshape(1, D),
        jnp.asarray(fc_w, jnp.float32).reshape(1, 1),
        jnp.asarray(fc_b, jnp.float32).reshape(1, 1),
    )


def _choose_batch_tile(B, D, block_b):
    """Pick the largest batch tile <= block_b (multiple of 8 sublanes) such that
    resident bf16 weights + double-buffered f32 activation tiles fit in a
    conservative VMEM budget (v7x has only 64 MiB physical VMEM)."""
    budget = 32 * 1024 * 1024
    weight_bytes = 2 * (D * D * 2 + D * 4)          # Wa/Wb (bf16) + biases (f32)
    TB = min(block_b, _round_up(max(B, 1), 8))
    TB = max(8, _round_up(TB, 8))
    while TB > 8:
        act_bytes = 2 * (4 * TB * D * 4 + TB * 4)    # 4 inputs + output, 2 buffers
        if weight_bytes + act_bytes <= budget:
            break
        TB = max(8, _round_up(TB // 2, 8))
    return TB, weight_bytes


def gated_combination(x1, x2, x3, x4, params, *, block_b=512):
    """x1..x4: [B, D] float32.  params: output of prepare_params.  Returns [B, 1] f32."""
    wa_bf, ba2, wb_bf, bb2, fcw2, fcb2 = params
    B, D = x1.shape

    TB, weight_bytes = _choose_batch_tile(B, D, block_b)
    B_pad = _round_up(B, TB)
    if B_pad != B:
        pad = ((0, B_pad - B), (0, 0))
        x1 = jnp.pad(x1, pad)
        x2 = jnp.pad(x2, pad)
        x3 = jnp.pad(x3, pad)
        x4 = jnp.pad(x4, pad)
    n_tiles = B_pad // TB

    # Explicit VMEM budget with 2x headroom, capped below v7x's 64 MiB physical VMEM.
    act_bytes = 2 * (4 * TB * D * 4 + TB * 4)
    vmem_limit = int(min(60 * 1024 * 1024,
                         max(16 * 1024 * 1024, 2 * (weight_bytes + act_bytes))))

    x_spec = pl.BlockSpec((TB, D), lambda i: (i, 0))
    w_spec = pl.BlockSpec((D, D), lambda i: (0, 0))   # constant index -> stays resident
    b_spec = pl.BlockSpec((1, D), lambda i: (0, 0))
    s_spec = pl.BlockSpec(memory_space=pltpu.MemorySpace.SMEM)  # (1,1) fc scalars

    out = pl.pallas_call(
        _gated_combination_kernel,
        out_shape=jax.ShapeDtypeStruct((B_pad, 1), jnp.float32),
        grid=(n_tiles,),
        in_specs=[x_spec, x_spec, x_spec, x_spec,
                  w_spec, b_spec, w_spec, b_spec,
                  s_spec, s_spec],
        out_specs=pl.BlockSpec((TB, 1), lambda i: (i, 0)),
        compiler_params=pltpu.CompilerParams(
            dimension_semantics=("parallel",),
            vmem_limit_bytes=vmem_limit),
    )(x1, x2, x3, x4, wa_bf, ba2, wb_bf, bb2, fcw2, fcb2)

    return out[:B]


# ---------------------------- references (tests) ----------------------------

def _reference_f32(x1, x2, x3, x4, wa, ba, wb, bb, fc_w, fc_b):
    """Exact f32 rendering of the torch module's default forward path."""
    g1 = jax.nn.sigmoid(x1 @ wa.T + ba)
    a = x1 * g1 + x2 * (1.0 - g1)
    g2 = jax.nn.sigmoid(x3 @ wb.T + bb)
    b = x3 * g2 + x4 * (1.0 - g2)
    eps = 1e-8
    cos = jnp.sum(a * b, axis=1) / (
        jnp.maximum(jnp.linalg.norm(a, axis=1), eps)
        * jnp.maximum(jnp.linalg.norm(b, axis=1), eps)
    )
    return jax.nn.sigmoid(fc_w * cos[:, None] + fc_b)


def _reference_bf16_matmul(x1, x2, x3, x4, wa, ba, wb, bb, fc_w, fc_b):
    """Reference emulating the kernel's bf16-matmul / f32-accumulate numerics."""
    z1 = jnp.einsum("bd,od->bo", x1.astype(jnp.bfloat16), wa.astype(jnp.bfloat16),
                    preferred_element_type=jnp.float32) + ba
    z2 = jnp.einsum("bd,od->bo", x3.astype(jnp.bfloat16), wb.astype(jnp.bfloat16),
                    preferred_element_type=jnp.float32) + bb
    g1 = jax.nn.sigmoid(z1)
    g2 = jax.nn.sigmoid(z2)
    a = x1 * g1 + x2 * (1.0 - g1)
    b = x3 * g2 + x4 * (1.0 - g2)
    eps = 1e-8
    cos = jnp.sum(a * b, axis=1) / (
        jnp.maximum(jnp.linalg.norm(a, axis=1), eps)
        * jnp.maximum(jnp.linalg.norm(b, axis=1), eps)
    )
    return jax.nn.sigmoid(fc_w * cos[:, None] + fc_b)


if __name__ == "__main__":
    # Small demo shapes; B=20 with block_b=8 exercises the batch grid (3 tiles)
    # plus padding of the ragged last tile.  D=128 matches the lane width.
    B, D = 20, 128

    key = jax.random.PRNGKey(0)
    keys = jax.random.split(key, 10)

    bound = 1.0 / (D ** 0.5)
    wa = jax.random.uniform(keys[0], (D, D), jnp.float32, -bound, bound)
    ba = jax.random.uniform(keys[1], (D,), jnp.float32, -bound, bound)
    wb = jax.random.uniform(keys[2], (D, D), jnp.float32, -bound, bound)
    bb = jax.random.uniform(keys[3], (D,), jnp.float32, -bound, bound)
    fc_w = jax.random.uniform(keys[4], (), jnp.float32, -1.0, 1.0)
    fc_b = jax.random.uniform(keys[5], (), jnp.float32, -1.0, 1.0)

    x1 = jax.random.normal(keys[6], (B, D), jnp.float32)
    x2 = jax.random.normal(keys[7], (B, D), jnp.float32)
    x3 = jax.random.normal(keys[8], (B, D), jnp.float32)
    x4 = jax.random.normal(keys[9], (B, D), jnp.float32)

    params = prepare_params(wa, ba, wb, bb, fc_w, fc_b)  # one-time prep
    out = gated_combination(x1, x2, x3, x4, params, block_b=8)
    out = jax.block_until_ready(out)
    assert out.shape == (B, 1)

    # Tight check vs. a reference matching the kernel's bf16-matmul numerics.
    ref_bf = _reference_bf16_matmul(x1, x2, x3, x4, wa, ba, wb, bb, fc_w, fc_b)
    assert jnp.allclose(out, ref_bf, atol=2e-3, rtol=2e-3), (out, ref_bf)

    # Loose check vs. the pure-f32 torch-semantics reference (bf16 gate matmul
    # shifts numerics slightly; the sigmoid(gate)/sigmoid(out) path is tolerant).
    ref_32 = _reference_f32(x1, x2, x3, x4, wa, ba, wb, bb, fc_w, fc_b)
    assert jnp.allclose(out, ref_32, atol=3e-2, rtol=3e-2), (out, ref_32)

    # TODO(synk): return_embeddings=True path (returning intermediate a, b) is not
    # exposed by this kernel; only the default classification path is implemented.
    print("KERNEL_OK")
</pallas_src>

<mosaic_0001>
module attributes {stable_mosaic.version = 11 : i64} {
  func.func @_gated_combination_kernel(%arg0: i32, %arg1: memref<8x128xf32, #tpu.memory_space<vmem>>, %arg2: memref<8x128xf32, #tpu.memory_space<vmem>>, %arg3: memref<8x128xf32, #tpu.memory_space<vmem>>, %arg4: memref<8x128xf32, #tpu.memory_space<vmem>>, %arg5: memref<128x128xbf16, #tpu.memory_space<vmem>>, %arg6: memref<1x128xf32, #tpu.memory_space<vmem>>, %arg7: memref<128x128xbf16, #tpu.memory_space<vmem>>, %arg8: memref<1x128xf32, #tpu.memory_space<vmem>>, %arg9: memref<1x1xf32, #tpu.memory_space<smem>>, %arg10: memref<1x1xf32, #tpu.memory_space<smem>>, %arg11: memref<8x1xf32, #tpu.memory_space<vmem>>) attributes {dimension_semantics = [#tpu.dimension_semantics<parallel>], iteration_bounds = array<i64: 3>, scalar_prefetch = 0 : i64, scratch_operands = 0 : i64, tpu.core_type = #tpu.core_type<tc>, window_params = [{transform_indices = @transform_0, window_bounds = array<i64: 8, 128>}, {transform_indices = @transform_1, window_bounds = array<i64: 8, 128>}, {transform_indices = @transform_2, window_bounds = array<i64: 8, 128>}, {transform_indices = @transform_3, window_bounds = array<i64: 8, 128>}, {pipeline_mode = #tpu.pipeline_mode<synchronous>, transform_indices = @transform_4, window_bounds = array<i64: 128, 128>}, {pipeline_mode = #tpu.pipeline_mode<synchronous>, transform_indices = @transform_5, window_bounds = array<i64: 1, 128>}, {pipeline_mode = #tpu.pipeline_mode<synchronous>, transform_indices = @transform_6, window_bounds = array<i64: 128, 128>}, {pipeline_mode = #tpu.pipeline_mode<synchronous>, transform_indices = @transform_7, window_bounds = array<i64: 1, 128>}, {transform_indices = @transform_8, window_bounds = array<i64: 1, 1>}, {transform_indices = @transform_9, window_bounds = array<i64: 1, 1>}, {transform_indices = @transform_10, window_bounds = array<i64: 8, 1>}]} {
    %c0 = arith.constant 0 : index
    %c0_0 = arith.constant 0 : index
    %0 = vector.load %arg1[%c0, %c0_0] : memref<8x128xf32, #tpu.memory_space<vmem>>, vector<8x128xf32>
    %c0_1 = arith.constant 0 : index
    %c0_2 = arith.constant 0 : index
    %1 = vector.load %arg2[%c0_1, %c0_2] : memref<8x128xf32, #tpu.memory_space<vmem>>, vector<8x128xf32>
    %c0_3 = arith.constant 0 : index
    %c0_4 = arith.constant 0 : index
    %2 = vector.load %arg3[%c0_3, %c0_4] : memref<8x128xf32, #tpu.memory_space<vmem>>, vector<8x128xf32>
    %c0_5 = arith.constant 0 : index
    %c0_6 = arith.constant 0 : index
    %3 = vector.load %arg4[%c0_5, %c0_6] : memref<8x128xf32, #tpu.memory_space<vmem>>, vector<8x128xf32>
    %4 = arith.truncf %0 : vector<8x128xf32> to vector<8x128xbf16>
    %c0_7 = arith.constant 0 : index
    %c0_8 = arith.constant 0 : index
    %5 = vector.load %arg5[%c0_7, %c0_8] : memref<128x128xbf16, #tpu.memory_space<vmem>>, vector<128x128xbf16>
    %cst = arith.constant dense<0.000000e+00> : vector<8x128xf32>
    %6 = tpu.matmul %4, %5, %cst {dimension_numbers = #tpu.dot_dimension_numbers<[1], [1], [0], [0], [0, 0, 1, 0], [], []>} : vector<8x128xbf16>, vector<128x128xbf16>, vector<8x128xf32> -> vector<8x128xf32>
    %c0_9 = arith.constant 0 : index
    %c0_10 = arith.constant 0 : index
    %7 = vector.load %arg6[%c0_9, %c0_10] : memref<1x128xf32, #tpu.memory_space<vmem>>, vector<1x128xf32>
    %8 = vector.broadcast %7 : vector<1x128xf32> to vector<8x128xf32>
    %9 = arith.addf %6, %8 : vector<8x128xf32>
    %10 = arith.truncf %2 : vector<8x128xf32> to vector<8x128xbf16>
    %c0_11 = arith.constant 0 : index
    %c0_12 = arith.constant 0 : index
    %11 = vector.load %arg7[%c0_11, %c0_12] : memref<128x128xbf16, #tpu.memory_space<vmem>>, vector<128x128xbf16>
    %cst_13 = arith.constant dense<0.000000e+00> : vector<8x128xf32>
    %12 = tpu.matmul %10, %11, %cst_13 {dimension_numbers = #tpu.dot_dimension_numbers<[1], [1], [0], [0], [0, 0, 1, 0], [], []>} : vector<8x128xbf16>, vector<128x128xbf16>, vector<8x128xf32> -> vector<8x128xf32>
    %c0_14 = arith.constant 0 : index
    %c0_15 = arith.constant 0 : index
    %13 = vector.load %arg8[%c0_14, %c0_15] : memref<1x128xf32, #tpu.memory_space<vmem>>, vector<1x128xf32>
    %14 = vector.broadcast %13 : vector<1x128xf32> to vector<8x128xf32>
    %15 = arith.addf %12, %14 : vector<8x128xf32>
    %16 = arith.negf %9 : vector<8x128xf32>
    %17 = math.exp %16 : vector<8x128xf32>
    %cst_16 = arith.constant 1.000000e+00 : f32
    %18 = vector.broadcast %cst_16 : f32 to vector<8x128xf32>
    %19 = arith.addf %18, %17 : vector<8x128xf32>
    %20 = arith.divf %18, %19 : vector<8x128xf32>
    %21 = arith.negf %15 : vector<8x128xf32>
    %22 = math.exp %21 : vector<8x128xf32>
    %cst_17 = arith.constant 1.000000e+00 : f32
    %23 = vector.broadcast %cst_17 : f32 to vector<8x128xf32>
    %24 = arith.addf %23, %22 : vector<8x128xf32>
    %25 = arith.divf %23, %24 : vector<8x128xf32>
    %26 = arith.subf %0, %1 : vector<8x128xf32>
    %27 = arith.mulf %20, %26 : vector<8x128xf32>
    %28 = arith.addf %1, %27 : vector<8x128xf32>
    %29 = arith.subf %2, %3 : vector<8x128xf32>
    %30 = arith.mulf %25, %29 : vector<8x128xf32>
    %31 = arith.addf %3, %30 : vector<8x128xf32>
    %32 = arith.mulf %28, %31 : vector<8x128xf32>
    %cst_18 = arith.constant dense<0.000000e+00> : vector<8xf32>
    %33 = vector.multi_reduction <add>, %32, %cst_18 [1] : vector<8x128xf32> to vector<8xf32>
    %34 = vector.shape_cast %33 : vector<8xf32> to vector<8x1xf32>
    %35 = arith.mulf %28, %28 : vector<8x128xf32>
    %cst_19 = arith.constant dense<0.000000e+00> : vector<8xf32>
    %36 = vector.multi_reduction <add>, %35, %cst_19 [1] : vector<8x128xf32> to vector<8xf32>
    %37 = vector.shape_cast %36 : vector<8xf32> to vector<8x1xf32>
    %cst_20 = arith.constant 1.000000e-16 : f32
    %38 = vector.broadcast %cst_20 : f32 to vector<8x1xf32>
    %39 = arith.maximumf %37, %38 : vector<8x1xf32>
    %40 = arith.mulf %31, %31 : vector<8x128xf32>
    %cst_21 = arith.constant dense<0.000000e+00> : vector<8xf32>
    %41 = vector.multi_reduction <add>, %40, %cst_21 [1] : vector<8x128xf32> to vector<8xf32>
    %42 = vector.shape_cast %41 : vector<8xf32> to vector<8x1xf32>
    %cst_22 = arith.constant 1.000000e-16 : f32
    %43 = vector.broadcast %cst_22 : f32 to vector<8x1xf32>
    %44 = arith.maximumf %42, %43 : vector<8x1xf32>
    %45 = math.rsqrt %39 : vector<8x1xf32>
    %46 = arith.mulf %34, %45 : vector<8x1xf32>
    %47 = math.rsqrt %44 : vector<8x1xf32>
    %48 = arith.mulf %46, %47 : vector<8x1xf32>
    %c0_23 = arith.constant 0 : index
    %c0_24 = arith.constant 0 : index
    %49 = memref.load %arg9[%c0_23, %c0_24] : memref<1x1xf32, #tpu.memory_space<smem>>
    %c0_25 = arith.constant 0 : index
    %c0_26 = arith.constant 0 : index
    %50 = memref.load %arg10[%c0_25, %c0_26] : memref<1x1xf32, #tpu.memory_space<smem>>
    %51 = vector.broadcast %49 : f32 to vector<8x1xf32>
    %52 = arith.mulf %51, %48 : vector<8x1xf32>
    %53 = vector.broadcast %50 : f32 to vector<8x1xf32>
    %54 = arith.addf %52, %53 : vector<8x1xf32>
    %55 = arith.negf %54 : vector<8x1xf32>
    %56 = math.exp %55 : vector<8x1xf32>
    %cst_27 = arith.constant 1.000000e+00 : f32
    %57 = vector.broadcast %cst_27 : f32 to vector<8x1xf32>
    %58 = arith.addf %57, %56 : vector<8x1xf32>
    %59 = arith.divf %57, %58 : vector<8x1xf32>
    %c0_28 = arith.constant 0 : index
    %c0_29 = arith.constant 0 : index
    %60 = vector.load %arg11[%c0_28, %c0_29] : memref<8x1xf32, #tpu.memory_space<vmem>>, vector<8x1xf32>
    tpu.vector_store %arg11[%c0_28, %c0_29], %59 {strides = array<i32>} : memref<8x1xf32, #tpu.memory_space<vmem>>, vector<8x1xf32>,
    return
  }
  func.func @transform_0(%arg0: i32) -> (i32, i32) {
    %c0_i32 = arith.constant 0 : i32
    %c0_i32_0 = arith.constant 0 : i32
    return %arg0, %c0_i32 : i32, i32
  }
  func.func @transform_1(%arg0: i32) -> (i32, i32) {
    %c0_i32 = arith.constant 0 : i32
    %c0_i32_0 = arith.constant 0 : i32
    return %arg0, %c0_i32 : i32, i32
  }
  func.func @transform_2(%arg0: i32) -> (i32, i32) {
    %c0_i32 = arith.constant 0 : i32
    %c0_i32_0 = arith.constant 0 : i32
    return %arg0, %c0_i32 : i32, i32
  }
  func.func @transform_3(%arg0: i32) -> (i32, i32) {
    %c0_i32 = arith.constant 0 : i32
    %c0_i32_0 = arith.constant 0 : i32
    return %arg0, %c0_i32 : i32, i32
  }
  func.func @transform_4(%arg0: i32) -> (i32, i32) {
    %c0_i32 = arith.constant 0 : i32
    %c0_i32_0 = arith.constant 0 : i32
    %c0_i32_1 = arith.constant 0 : i32
    return %c0_i32, %c0_i32_0 : i32, i32
  }
  func.func @transform_5(%arg0: i32) -> (i32, i32) {
    %c0_i32 = arith.constant 0 : i32
    %c0_i32_0 = arith.constant 0 : i32
    %c0_i32_1 = arith.constant 0 : i32
    return %c0_i32, %c0_i32_0 : i32, i32
  }
  func.func @transform_6(%arg0: i32) -> (i32, i32) {
    %c0_i32 = arith.constant 0 : i32
    %c0_i32_0 = arith.constant 0 : i32
    %c0_i32_1 = arith.constant 0 : i32
    return %c0_i32, %c0_i32_0 : i32, i32
  }
  func.func @transform_7(%arg0: i32) -> (i32, i32) {
    %c0_i32 = arith.constant 0 : i32
    %c0_i32_0 = arith.constant 0 : i32
    %c0_i32_1 = arith.constant 0 : i32
    return %c0_i32, %c0_i32_0 : i32, i32
  }
  func.func @transform_8(%arg0: i32) -> (i32, i32) {
    %c0_i32 = arith.constant 0 : i32
    %c0_i32_0 = arith.constant 0 : i32
    %c0_i32_1 = arith.constant 0 : i32
    return %c0_i32, %c0_i32_0 : i32, i32
  }
  func.func @transform_9(%arg0: i32) -> (i32, i32) {
    %c0_i32 = arith.constant 0 : i32
    %c0_i32_0 = arith.constant 0 : i32
    %c0_i32_1 = arith.constant 0 : i32
    return %c0_i32, %c0_i32_0 : i32, i32
  }
  func.func @transform_10(%arg0: i32) -> (i32, i32) {
    %c0_i32 = arith.constant 0 : i32
    %c0_i32_0 = arith.constant 0 : i32
    return %arg0, %c0_i32 : i32, i32
  }
}

</mosaic_0001>

<llo_original>
// kernel: tpu_custom_call.1
$region0: #{tpu_custom_call.1}
  #allocation0 [shape = 'u32[]', space=smem, size = 0x4, offset = 0x4, fixed_abs, tag = 'smem constant byte address 0x4 - core index']
  #allocation1 [shape = 'u32[144,128]{1,0:T(1,128)}', space=vmem, size = 0x12000, scoped, tag = 'internal scratch']
  #allocation2 [shape = 'f32[1,1]{1,0:T(1,128)S(6)}', space=smem, size = 0x200, scoped, tag = 'scoped memory for tpu_custom_call.1']
  #allocation3 [shape = 'f32[1,1]{1,0:T(1,128)S(6)}', space=smem, size = 0x200, scoped, tag = 'scoped memory for tpu_custom_call.1']
  %s0 = inlined_call_operand.hbm [shape: f32[24,128], index: 0, kind: input, shape index: {}]
  %s1 = inlined_call_operand.hbm [shape: f32[24,128], index: 1, kind: input, shape index: {}]
  %s2 = inlined_call_operand.hbm [shape: f32[24,128], index: 2, kind: input, shape index: {}]
  %s3 = inlined_call_operand.hbm [shape: f32[24,128], index: 3, kind: input, shape index: {}]
  %s4 = inlined_call_operand.hbm [shape: bf16[128,128], index: 4, kind: input, shape index: {}]
  %s5 = inlined_call_operand.vmem [shape: f32[1,128], index: 5, kind: input, shape index: {}]
  %s6 = inlined_call_operand.hbm [shape: bf16[128,128], index: 6, kind: input, shape index: {}]
  %s7 = inlined_call_operand.vmem [shape: f32[1,128], index: 7, kind: input, shape index: {}]
  %s8 = inlined_call_operand.<no memory space> [shape: f32[1,1], index: 8, kind: input, shape index: {}]
  %s9 = inlined_call_operand.<no memory space> [shape: f32[1,1], index: 9, kind: input, shape index: {}]
  %s10 = inlined_call_operand.vmem [shape: f32[24,1], index: 10, kind: output, shape index: {}]
  %s11 = sld [smem:[#allocation0]]
  $region97: #{tpu_custom_call.1} parent=0
    _
  %s13 = ssub.s32 1, %s11
  %s14 = scalar_select 0, %s13, %s11
  %15 = sst [smem:[#allocation2]] %s8
  %16 = sst [smem:[#allocation3]] %s9
  $region1: #{tpu_custom_call.1} parent=0
    #allocation4 [shape = 'u8[8192]{0}', space=vmem, size = 0x2000, scoped, tag = 'input window, operand 0']
    #allocation5 [shape = 's32[2]{0}', space=sflag, size = 0x8, scoped, tag = 'scoped memory for tpu_custom_call.1']
    #allocation6 [shape = 'u8[8192]{0}', space=vmem, size = 0x2000, scoped, tag = 'input window, operand 1']
    #allocation7 [shape = 's32[2]{0}', space=sflag, size = 0x8, scoped, tag = 'scoped memory for tpu_custom_call.1']
    #allocation8 [shape = 'u8[8192]{0}', space=vmem, size = 0x2000, scoped, tag = 'input window, operand 2']
    #allocation9 [shape = 'u8[8192]{0}', space=vmem, size = 0x2000, scoped, tag = 'input window, operand 3']
    #allocation10 [shape = 's32[2]{0}', space=sflag, size = 0x8, scoped, tag = 'scoped memory for tpu_custom_call.1']
    #allocation11 [shape = 'u8[32768]{0}', space=vmem, size = 0x8000, scoped, tag = 'input window, operand 4, single buffered']
    #allocation12 [shape = 'u8[32768]{0}', space=vmem, size = 0x8000, scoped, tag = 'input window, operand 6, single buffered']
    #allocation13 [shape = 's32[1]{0}', space=sflag, size = 0x4, scoped, tag = 'scoped memory for tpu_custom_call.1']
    %17 = vsyncpa [#allocation5], 0
    %s18 = scalar_lea.sflag [#allocation5], 1
    %19 = vsyncpa %s18, 0
    %20 = vsyncpa [#allocation7], 0
    %s21 = scalar_lea.sflag [#allocation7], 1
    %22 = vsyncpa %s21, 0
    %23 = vsyncpa [#allocation10], 0
    %s24 = scalar_lea.sflag [#allocation10], 1
    %25 = vsyncpa %s24, 0
    %26 = vsyncpa [#allocation13], 0
    loop: start=0, step=1, limit=5
    $region2: #{tpu_custom_call.1} parent=1 // loop_pre_header
      _
    $region3: #{tpu_custom_call.1} parent=1 // loop_header
      %s28 = sphi 0, %s32
      %p29 = scmp.ge.s32.totalorder %s28, 5
      %s38 = sphi 0, %s40
      %s41 = sphi 0, %s38
      %s42 = sphi 0, %s41
      %s58 = sphi 0, %s42
      %s64 = sphi 0, %s66
      %s67 = sphi 0, %s64
      %s68 = sphi 0, %s67
      %s84 = sphi 0, %s68
      %s90 = sphi 0, %s92
      %s93 = sphi 0, %s90
      %s94 = sphi 0, %s93
      %s110 = sphi 0, %s94
      %s116 = sphi 0, %s118
      %s119 = sphi 0, %s116
      %s120 = sphi 0, %s119
      %s136 = sphi 0, %s120
      %s140 = sphi 0, %s140
      %s142 = sphi 0, %s140
      %s143 = sphi 0, %s142
      %s157 = sphi 0, %s143
      %s161 = sphi 0, %s161
      %s163 = sphi 0, %s161
      %s164 = sphi 0, %s163
      %s178 = sphi 0, %s164
      %s182 = sphi 0, %s182
      %s184 = sphi 0, %s182
      %s185 = sphi 0, %s184
      %s199 = sphi 0, %s185
      %s203 = sphi 0, %s203
      %s205 = sphi 0, %s203
      %s206 = sphi 0, %s205
      %s220 = sphi 0, %s206
      %s224 = sphi 0, %s224
      %s226 = sphi 0, %s224
      %s227 = sphi 0, %s226
      %s241 = sphi 0, %s227
      %s245 = sphi 0, %s245
      %s247 = sphi 0, %s245
      %s248 = sphi 0, %s247
      %s262 = sphi 0, %s248
      %s268 = sphi 0, %s270
      %s271 = sphi 0, %s268
      %s272 = sphi 0, %s271
      %s288 = sphi 0, %s272
    $region4: #{tpu_custom_call.1} parent=1 // loop_header_branch
      %31 = sbr.rel (%p29) target = $region8
    $region5: #{tpu_custom_call.1} parent=1 // loop_body
      %s33 = ssub.s32 %s28, 1
      %s34 = ssub.s32 %s28, 2
      %s35 = sadd.s32 %s28, 1
      %s36 = ssub.s32 %s28, %s35
      %p37 = scmp.eq.s32.totalorder %s36, 0
      %s39 = sadd.s32 %s38, 1
      %s40 = scalar_select %p37, %s38, %s39
      %p43 = pneg %p37
      %p44 = scmp.eq.s32.totalorder %s28, 2
      %p45 = por %p43, %p44
      %p46 = scmp.ne.s32.totalorder %s38, %s41
      %p47 = scmp.eq.s32.totalorder %s28, 0
      %p48 = por %p46, %p47
      %p49 = scmp.ne.s32.totalorder %s38, %s41
      %p50 = scmp.eq.s32.totalorder %s33, 2
      %p51 = por %p49, %p50
      %p52 = scmp.ne.s32.totalorder %s41, %s42
      %p53 = scmp.eq.s32.totalorder %s33, 0
      %p54 = por %p52, %p53
      %p55 = scmp.ne.s32.totalorder %s41, %s42
      %p56 = scmp.eq.s32.totalorder %s34, 2
      %p57 = por %p55, %p56
      %p59 = scmp.ne.s32.totalorder %s42, %s58
      %p60 = scmp.eq.s32.totalorder %s34, 0
      %p61 = por %p59, %p60
      %s62 = ssub.s32 %s28, %s35
      %p63 = scmp.eq.s32.totalorder %s62, 0
      %s65 = sadd.s32 %s64, 1
      %s66 = scalar_select %p63, %s64, %s65
      %p69 = pneg %p63
      %p70 = scmp.eq.s32.totalorder %s28, 2
      %p71 = por %p69, %p70
      %p72 = scmp.ne.s32.totalorder %s64, %s67
      %p73 = scmp.eq.s32.totalorder %s28, 0
      %p74 = por %p72, %p73
      %p75 = scmp.ne.s32.totalorder %s64, %s67
      %p76 = scmp.eq.s32.totalorder %s33, 2
      %p77 = por %p75, %p76
      %p78 = scmp.ne.s32.totalorder %s67, %s68
      %p79 = scmp.eq.s32.totalorder %s33, 0
      %p80 = por %p78, %p79
      %p81 = scmp.ne.s32.totalorder %s67, %s68
      %p82 = scmp.eq.s32.totalorder %s34, 2
      %p83 = por %p81, %p82
      %p85 = scmp.ne.s32.totalorder %s68, %s84
      %p86 = scmp.eq.s32.totalorder %s34, 0
      %p87 = por %p85, %p86
      %s88 = ssub.s32 %s28, %s35
      %p89 = scmp.eq.s32.totalorder %s88, 0
      %s91 = sadd.s32 %s90, 1
      %s92 = scalar_select %p89, %s90, %s91
      %p95 = pneg %p89
      %p96 = scmp.eq.s32.totalorder %s28, 2
      %p97 = por %p95, %p96
      %p98 = scmp.ne.s32.totalorder %s90, %s93
      %p99 = scmp.eq.s32.totalorder %s28, 0
      %p100 = por %p98, %p99
      %p101 = scmp.ne.s32.totalorder %s90, %s93
      %p102 = scmp.eq.s32.totalorder %s33, 2
      %p103 = por %p101, %p102
      %p104 = scmp.ne.s32.totalorder %s93, %s94
      %p105 = scmp.eq.s32.totalorder %s33, 0
      %p106 = por %p104, %p105
      %p107 = scmp.ne.s32.totalorder %s93, %s94
      %p108 = scmp.eq.s32.totalorder %s34, 2
      %p109 = por %p107, %p108
      %p111 = scmp.ne.s32.totalorder %s94, %s110
      %p112 = scmp.eq.s32.totalorder %s34, 0
      %p113 = por %p111, %p112
      %s114 = ssub.s32 %s28, %s35
      %p115 = scmp.eq.s32.totalorder %s114, 0
      %s117 = sadd.s32 %s116, 1
      %s118 = scalar_select %p115, %s116, %s117
      %p121 = pneg %p115
      %p122 = scmp.eq.s32.totalorder %s28, 2
      %p123 = por %p121, %p122
      %p124 = scmp.ne.s32.totalorder %s116, %s119
      %p125 = scmp.eq.s32.totalorder %s28, 0
      %p126 = por %p124, %p125
      %p127 = scmp.ne.s32.totalorder %s116, %s119
      %p128 = scmp.eq.s32.totalorder %s33, 2
      %p129 = por %p127, %p128
      %p130 = scmp.ne.s32.totalorder %s119, %s120
      %p131 = scmp.eq.s32.totalorder %s33, 0
      %p132 = por %p130, %p131
      %p133 = scmp.ne.s32.totalorder %s119, %s120
      %p134 = scmp.eq.s32.totalorder %s34, 2
      %p135 = por %p133, %p134
      %p137 = scmp.ne.s32.totalorder %s120, %s136
      %p138 = scmp.eq.s32.totalorder %s34, 0
      %p139 = por %p137, %p138
      %s141 = sadd.s32 %s140, 1
      %p144 = scmp.eq.s32.totalorder %s28, 2
      %p145 = scmp.ne.s32.totalorder %s140, %s142
      %p146 = scmp.eq.s32.totalorder %s28, 0
      %p147 = por %p145, %p146
      %p148 = scmp.ne.s32.totalorder %s140, %s142
      %p149 = scmp.eq.s32.totalorder %s33, 2
      %p150 = por %p148, %p149
      %p151 = scmp.ne.s32.totalorder %s142, %s143
      %p152 = scmp.eq.s32.totalorder %s33, 0
      %p153 = por %p151, %p152
      %p154 = scmp.ne.s32.totalorder %s142, %s143
      %p155 = scmp.eq.s32.totalorder %s34, 2
      %p156 = por %p154, %p155
      %p158 = scmp.ne.s32.totalorder %s143, %s157
      %p159 = scmp.eq.s32.totalorder %s34, 0
      %p160 = por %p158, %p159
      %s162 = sadd.s32 %s161, 1
      %p165 = scmp.eq.s32.totalorder %s28, 2
      %p166 = scmp.ne.s32.totalorder %s161, %s163
      %p167 = scmp.eq.s32.totalorder %s28, 0
      %p168 = por %p166, %p167
      %p169 = scmp.ne.s32.totalorder %s161, %s163
      %p170 = scmp.eq.s32.totalorder %s33, 2
      %p171 = por %p169, %p170
      %p172 = scmp.ne.s32.totalorder %s163, %s164
      %p173 = scmp.eq.s32.totalorder %s33, 0
      %p174 = por %p172, %p173
      %p175 = scmp.ne.s32.totalorder %s163, %s164
      %p176 = scmp.eq.s32.totalorder %s34, 2
      %p177 = por %p175, %p176
      %p179 = scmp.ne.s32.totalorder %s164, %s178
      %p180 = scmp.eq.s32.totalorder %s34, 0
      %p181 = por %p179, %p180
      %s183 = sadd.s32 %s182, 1
      %p186 = scmp.eq.s32.totalorder %s28, 2
      %p187 = scmp.ne.s32.totalorder %s182, %s184
      %p188 = scmp.eq.s32.totalorder %s28, 0
      %p189 = por %p187, %p188
      %p190 = scmp.ne.s32.totalorder %s182, %s184
      %p191 = scmp.eq.s32.totalorder %s33, 2
      %p192 = por %p190, %p191
      %p193 = scmp.ne.s32.totalorder %s184, %s185
      %p194 = scmp.eq.s32.totalorder %s33, 0
      %p195 = por %p193, %p194
      %p196 = scmp.ne.s32.totalorder %s184, %s185
      %p197 = scmp.eq.s32.totalorder %s34, 2
      %p198 = por %p196, %p197
      %p200 = scmp.ne.s32.totalorder %s185, %s199
      %p201 = scmp.eq.s32.totalorder %s34, 0
      %p202 = por %p200, %p201
      %s204 = sadd.s32 %s203, 1
      %p207 = scmp.eq.s32.totalorder %s28, 2
      %p208 = scmp.ne.s32.totalorder %s203, %s205
      %p209 = scmp.eq.s32.totalorder %s28, 0
      %p210 = por %p208, %p209
      %p211 = scmp.ne.s32.totalorder %s203, %s205
      %p212 = scmp.eq.s32.totalorder %s33, 2
      %p213 = por %p211, %p212
      %p214 = scmp.ne.s32.totalorder %s205, %s206
      %p215 = scmp.eq.s32.totalorder %s33, 0
      %p216 = por %p214, %p215
      %p217 = scmp.ne.s32.totalorder %s205, %s206
      %p218 = scmp.eq.s32.totalorder %s34, 2
      %p219 = por %p217, %p218
      %p221 = scmp.ne.s32.totalorder %s206, %s220
      %p222 = scmp.eq.s32.totalorder %s34, 0
      %p223 = por %p221, %p222
      %s225 = sadd.s32 %s224, 1
      %p228 = scmp.eq.s32.totalorder %s28, 2
      %p229 = scmp.ne.s32.totalorder %s224, %s226
      %p230 = scmp.eq.s32.totalorder %s28, 0
      %p231 = por %p229, %p230
      %p232 = scmp.ne.s32.totalorder %s224, %s226
      %p233 = scmp.eq.s32.totalorder %s33, 2
      %p234 = por %p232, %p233
      %p235 = scmp.ne.s32.totalorder %s226, %s227
      %p236 = scmp.eq.s32.totalorder %s33, 0
      %p237 = por %p235, %p236
      %p238 = scmp.ne.s32.totalorder %s226, %s227
      %p239 = scmp.eq.s32.totalorder %s34, 2
      %p240 = por %p238, %p239
      %p242 = scmp.ne.s32.totalorder %s227, %s241
      %p243 = scmp.eq.s32.totalorder %s34, 0
      %p244 = por %p242, %p243
      %s246 = sadd.s32 %s245, 1
      %p249 = scmp.eq.s32.totalorder %s28, 2
      %p250 = scmp.ne.s32.totalorder %s245, %s247
      %p251 = scmp.eq.s32.totalorder %s28, 0
      %p252 = por %p250, %p251
      %p253 = scmp.ne.s32.totalorder %s245, %s247
      %p254 = scmp.eq.s32.totalorder %s33, 2
      %p255 = por %p253, %p254
      %p256 = scmp.ne.s32.totalorder %s247, %s248
      %p257 = scmp.eq.s32.totalorder %s33, 0
      %p258 = por %p256, %p257
      %p259 = scmp.ne.s32.totalorder %s247, %s248
      %p260 = scmp.eq.s32.totalorder %s34, 2
      %p261 = por %p259, %p260
      %p263 = scmp.ne.s32.totalorder %s248, %s262
      %p264 = scmp.eq.s32.totalorder %s34, 0
      %p265 = por %p263, %p264
      %s266 = ssub.s32 %s28, %s35
      %p267 = scmp.eq.s32.totalorder %s266, 0
      %s269 = sadd.s32 %s268, 1
      %s270 = scalar_select %p267, %s268, %s269
      %p273 = pneg %p267
      %p274 = scmp.eq.s32.totalorder %s28, 2
      %p275 = por %p273, %p274
      %p276 = scmp.ne.s32.totalorder %s268, %s271
      %p277 = scmp.eq.s32.totalorder %s28, 0
      %p278 = por %p276, %p277
      %p279 = scmp.ne.s32.totalorder %s268, %s271
      %p280 = scmp.eq.s32.totalorder %s33, 2
      %p281 = por %p279, %p280
      %p282 = scmp.ne.s32.totalorder %s271, %s272
      %p283 = scmp.eq.s32.totalorder %s33, 0
      %p284 = por %p282, %p283
      %p285 = scmp.ne.s32.totalorder %s271, %s272
      %p286 = scmp.eq.s32.totalorder %s34, 2
      %p287 = por %p285, %p286
      %p289 = scmp.ne.s32.totalorder %s272, %s288
      %p290 = scmp.eq.s32.totalorder %s34, 0
      %p291 = por %p289, %p290
      %p292 = scmp.le.s32.totalorder 1, %s28
      %p293 = scmp.lt.s32.totalorder %s28, 4
      %p294 = pnand %p292, %p293
      %p295 = pneg %p294
      // Predicated region
      $region9: #{tpu_custom_call.1} parent=5 // pred_check
        _
      $region10: #{tpu_custom_call.1} parent=5 // pred_check_branch
        %297 = sbr.rel (%p294) target = $region12
      $region11: #{tpu_custom_call.1} parent=5 // pred_region
        %s298 = ssub.s32 %s28, 1
        // Predicated region
        $region13: #{tpu_custom_call.1} parent=11 // pred_check
          %p299 = pneg %p153
        $region14: #{tpu_custom_call.1} parent=11 // pred_check_branch
          %301 = sbr.rel (%p299) target = $region16
        $region15: #{tpu_custom_call.1} parent=11 // pred_region
          %s303 = ssub.s32 1024, 1024
          %304 = vsyncadd [#allocation10], %s303
          %s305 = sshll.u32 [#allocation11], 4
          %s306 = int_to_ptr.vmem [resolvable:$true] %s305
          %311 = dma.hbm_to_vmem [thread:$0]  %s4, 1024, %s306, [#allocation10], 64, 64, 4
        $region16: #{tpu_custom_call.1} parent=11 // pred_fallthru
          _
        // Predicated region
        $region17: #{tpu_custom_call.1} parent=11 // pred_check
          %p312 = pneg %p174
        $region18: #{tpu_custom_call.1} parent=11 // pred_check_branch
          %314 = sbr.rel (%p312) target = $region20
        $region19: #{tpu_custom_call.1} parent=11 // pred_region
          _
        $region20: #{tpu_custom_call.1} parent=11 // pred_fallthru
          _
        // Predicated region
        $region21: #{tpu_custom_call.1} parent=11 // pred_check
          %p315 = pneg %p195
        $region22: #{tpu_custom_call.1} parent=11 // pred_check_branch
          %317 = sbr.rel (%p315) target = $region24
        $region23: #{tpu_custom_call.1} parent=11 // pred_region
          %s319 = ssub.s32 1024, 1024
          %320 = vsyncadd [#allocation13], %s319
          %s321 = sshll.u32 [#allocation12], 4
          %s322 = int_to_ptr.vmem [resolvable:$true] %s321
          %327 = dma.hbm_to_vmem [thread:$0]  %s6, 1024, %s322, [#allocation13], 64, 64, 4
        $region24: #{tpu_custom_call.1} parent=11 // pred_fallthru
          _
        // Predicated region
        $region25: #{tpu_custom_call.1} parent=11 // pred_check
          %p328 = pneg %p216
        $region26: #{tpu_custom_call.1} parent=11 // pred_check_branch
          %330 = sbr.rel (%p328) target = $region28
        $region27: #{tpu_custom_call.1} parent=11 // pred_region
          _
        $region28: #{tpu_custom_call.1} parent=11 // pred_fallthru
          _
        // Predicated region
        $region29: #{tpu_custom_call.1} parent=11 // pred_check
          %p331 = pneg %p237
        $region30: #{tpu_custom_call.1} parent=11 // pred_check_branch
          %333 = sbr.rel (%p331) target = $region32
        $region31: #{tpu_custom_call.1} parent=11 // pred_region
          _
        $region32: #{tpu_custom_call.1} parent=11 // pred_fallthru
          _
        // Predicated region
        $region33: #{tpu_custom_call.1} parent=11 // pred_check
          %p334 = pneg %p258
        $region34: #{tpu_custom_call.1} parent=11 // pred_check_branch
          %336 = sbr.rel (%p334) target = $region36
        $region35: #{tpu_custom_call.1} parent=11 // pred_region
          _
        $region36: #{tpu_custom_call.1} parent=11 // pred_fallthru
          _
      $region12: #{tpu_custom_call.1} parent=5 // pred_fallthru
        _
      %p337 = scmp.lt.s32.totalorder %s28, 3
      // Predicated region
      $region37: #{tpu_custom_call.1} parent=5 // pred_check
        %p338 = pneg %p337
      $region38: #{tpu_custom_call.1} parent=5 // pred_check_branch
        %340 = sbr.rel (%p338) target = $region40
      $region39: #{tpu_custom_call.1} parent=5 // pred_region
        // Predicated region
        $region41: #{tpu_custom_call.1} parent=39 // pred_check
          %p341 = pneg %p48
        $region42: #{tpu_custom_call.1} parent=39 // pred_check_branch
          %343 = sbr.rel (%p341) target = $region44
        $region43: #{tpu_custom_call.1} parent=39 // pred_region
          %s344 = sand.u32 %s38, 1
          %s345 = scalar_lea.sflag [#allocation5], %s344
          %s346 = sand.u32 %s38, 1
          %s347 = smul.addr %s346, 8
          %s348 = scalar_lea.vmem [#allocation4], %s347
          %s350 = ssub.s32 128, 128
          %351 = vsyncadd %s345, %s350
          %s352 = smul.addr %s28, 128
          %s353 = scalar_lea.hbm %s0, %s352
          %s355 = sshll.u32 %s348, 4
          %s356 = int_to_ptr.vmem [resolvable:$true] %s355
          %358 = dma.hbm_to_vmem [thread:$0]  %s353, 128, %s356, %s345
        $region44: #{tpu_custom_call.1} parent=39 // pred_fallthru
          _
        // Predicated region
        $region45: #{tpu_custom_call.1} parent=39 // pred_check
          %p359 = pneg %p74
        $region46: #{tpu_custom_call.1} parent=39 // pred_check_branch
          %361 = sbr.rel (%p359) target = $region48
        $region47: #{tpu_custom_call.1} parent=39 // pred_region
          %s362 = sand.u32 %s28, 1
          %s363 = scalar_lea.sflag [#allocation7], %s362
          %s364 = sand.u32 %s64, 1
          %s365 = smul.addr %s364, 8
          %s366 = scalar_lea.vmem [#allocation6], %s365
          %s368 = ssub.s32 128, 128
          %369 = vsyncadd %s363, %s368
          %s370 = smul.addr %s28, 128
          %s371 = scalar_lea.hbm %s1, %s370
          %s373 = sshll.u32 %s366, 4
          %s374 = int_to_ptr.vmem [resolvable:$true] %s373
          %376 = dma.hbm_to_vmem [thread:$0]  %s371, 128, %s374, %s363
        $region48: #{tpu_custom_call.1} parent=39 // pred_fallthru
          _
        // Predicated region
        $region49: #{tpu_custom_call.1} parent=39 // pred_check
          %p377 = pneg %p100
        $region50: #{tpu_custom_call.1} parent=39 // pred_check_branch
          %379 = sbr.rel (%p377) target = $region52
        $region51: #{tpu_custom_call.1} parent=39 // pred_region
          %s380 = sand.u32 %s28, 1
          %s381 = scalar_lea.sflag [#allocation7], %s380
          %s382 = sand.u32 %s90, 1
          %s383 = smul.addr %s382, 8
          %s384 = scalar_lea.vmem [#allocation8], %s383
          %s386 = ssub.s32 128, 128
          %387 = vsyncadd %s381, %s386
          %s388 = smul.addr %s28, 128
          %s389 = scalar_lea.hbm %s2, %s388
          %s391 = sshll.u32 %s384, 4
          %s392 = int_to_ptr.vmem [resolvable:$true] %s391
          %394 = dma.hbm_to_vmem [thread:$0]  %s389, 128, %s392, %s381
        $region52: #{tpu_custom_call.1} parent=39 // pred_fallthru
          _
        // Predicated region
        $region53: #{tpu_custom_call.1} parent=39 // pred_check
          %p395 = pneg %p126
        $region54: #{tpu_custom_call.1} parent=39 // pred_check_branch
          %397 = sbr.rel (%p395) target = $region56
        $region55: #{tpu_custom_call.1} parent=39 // pred_region
          %s398 = sand.u32 %s28, 1
          %s399 = scalar_lea.sflag [#allocation10], %s398
          %s400 = sand.u32 %s116, 1
          %s401 = smul.addr %s400, 8
          %s402 = scalar_lea.vmem [#allocation9], %s401
          %s404 = ssub.s32 128, 128
          %405 = vsyncadd %s399, %s404
          %s406 = smul.addr %s28, 128
          %s407 = scalar_lea.hbm %s3, %s406
          %s409 = sshll.u32 %s402, 4
          %s410 = int_to_ptr.vmem [resolvable:$true] %s409
          %412 = dma.hbm_to_vmem [thread:$0]  %s407, 128, %s410, %s399
        $region56: #{tpu_custom_call.1} parent=39 // pred_fallthru
          _
      $region40: #{tpu_custom_call.1} parent=5 // pred_fallthru
        _
      %p413 = scmp.le.s32.totalorder 1, %s28
      %p414 = scmp.lt.s32.totalorder %s28, 4
      %p415 = pnand %p413, %p414
      %p416 = pneg %p415
      // Predicated region
      $region57: #{tpu_custom_call.1} parent=5 // pred_check
        _
      $region58: #{tpu_custom_call.1} parent=5 // pred_check_branch
        %418 = sbr.rel (%p415) target = $region60
      $region59: #{tpu_custom_call.1} parent=5 // pred_region
        %s419 = ssub.s32 %s28, 1
        %s420 = sand.u32 %s41, 1
        %s421 = scalar_lea.sflag [#allocation5], %s420
        %s422 = sand.u32 %s41, 1
        %s423 = smul.addr %s422, 8
        %s424 = scalar_lea.vmem [#allocation4], %s423
        // Predicated region
        $region61: #{tpu_custom_call.1} parent=59 // pred_check
          %p425 = pneg %p54
        $region62: #{tpu_custom_call.1} parent=59 // pred_check_branch
          %427 = sbr.rel (%p425) target = $region64
        $region63: #{tpu_custom_call.1} parent=59 // pred_region
          %428 = dma.done %s421, 128
        $region64: #{tpu_custom_call.1} parent=59 // pred_fallthru
          _
        %s429 = sand.u32 %s33, 1
        %s430 = scalar_lea.sflag [#allocation7], %s429
        %s431 = sand.u32 %s67, 1
        %s432 = smul.addr %s431, 8
        %s433 = scalar_lea.vmem [#allocation6], %s432
        // Predicated region
        $region65: #{tpu_custom_call.1} parent=59 // pred_check
          %p434 = pneg %p80
        $region66: #{tpu_custom_call.1} parent=59 // pred_check_branch
          %436 = sbr.rel (%p434) target = $region68
        $region67: #{tpu_custom_call.1} parent=59 // pred_region
          %437 = dma.done %s430, 128
        $region68: #{tpu_custom_call.1} parent=59 // pred_fallthru
          _
        %s438 = sand.u32 %s33, 1
        %s439 = scalar_lea.sflag [#allocation7], %s438
        %s440 = sand.u32 %s93, 1
        %s441 = smul.addr %s440, 8
        %s442 = scalar_lea.vmem [#allocation8], %s441
        // Predicated region
        $region69: #{tpu_custom_call.1} parent=59 // pred_check
          %p443 = pneg %p106
        $region70: #{tpu_custom_call.1} parent=59 // pred_check_branch
          %445 = sbr.rel (%p443) target = $region72
        $region71: #{tpu_custom_call.1} parent=59 // pred_region
          %446 = dma.done %s439, 128
        $region72: #{tpu_custom_call.1} parent=59 // pred_fallthru
          _
        %s447 = sand.u32 %s33, 1
        %s448 = scalar_lea.sflag [#allocation10], %s447
        %s449 = sand.u32 %s119, 1
        %s450 = smul.addr %s449, 8
        %s451 = scalar_lea.vmem [#allocation9], %s450
        // Predicated region
        $region73: #{tpu_custom_call.1} parent=59 // pred_check
          %p452 = pneg %p132
        $region74: #{tpu_custom_call.1} parent=59 // pred_check_branch
          %454 = sbr.rel (%p452) target = $region76
        $region75: #{tpu_custom_call.1} parent=59 // pred_region
          %455 = dma.done %s448, 128
        $region76: #{tpu_custom_call.1} parent=59 // pred_fallthru
          _
        // Predicated region
        $region77: #{tpu_custom_call.1} parent=59 // pred_check
          %p456 = pneg %p153
        $region78: #{tpu_custom_call.1} parent=59 // pred_check_branch
          %458 = sbr.rel (%p456) target = $region80
        $region79: #{tpu_custom_call.1} parent=59 // pred_region
          %459 = dma.done [#allocation10], 1024
        $region80: #{tpu_custom_call.1} parent=59 // pred_fallthru
          _
        // Predicated region
        $region81: #{tpu_custom_call.1} parent=59 // pred_check
          %p460 = pneg %p195
        $region82: #{tpu_custom_call.1} parent=59 // pred_check_branch
          %462 = sbr.rel (%p460) target = $region84
        $region83: #{tpu_custom_call.1} parent=59 // pred_region
          %463 = dma.done [#allocation13], 1024
        $region84: #{tpu_custom_call.1} parent=59 // pred_fallthru
          _
        %s464 = sand.u32 %s41, 1
        %s465 = scalar_lea.sflag [#allocation5], %s464
        %s466 = sand.u32 %s41, 1
        %s467 = smul.addr %s466, 8
        %s468 = scalar_lea.vmem [#allocation4], %s467
        %p469 = pneg %p54
        %p470 = pneg %p51
        %s471 = sand.u32 %s33, 1
        %s472 = scalar_lea.sflag [#allocation7], %s471
        %s473 = sand.u32 %s67, 1
        %s474 = smul.addr %s473, 8
        %s475 = scalar_lea.vmem [#allocation6], %s474
        %p476 = pneg %p80
        %p477 = pneg %p77
        %s478 = sand.u32 %s33, 1
        %s479 = scalar_lea.sflag [#allocation7], %s478
        %s480 = sand.u32 %s93, 1
        %s481 = smul.addr %s480, 8
        %s482 = scalar_lea.vmem [#allocation8], %s481
        %p483 = pneg %p106
        %p484 = pneg %p103
        %s485 = sand.u32 %s33, 1
        %s486 = scalar_lea.sflag [#allocation10], %s485
        %s487 = sand.u32 %s119, 1
        %s488 = smul.addr %s487, 8
        %s489 = scalar_lea.vmem [#allocation9], %s488
        %p490 = pneg %p132
        %p491 = pneg %p129
        %p492 = pneg %p153
        %p493 = pneg %p150
        %p494 = pneg %p174
        %p495 = pneg %p171
        %p496 = pneg %p195
        %p497 = pneg %p192
        %p498 = pneg %p216
        %p499 = pneg %p213
        %p500 = pneg %p237
        %p501 = pneg %p234
        %p502 = pneg %p258
        %p503 = pneg %p255
        %p504 = pneg %p284
        %p505 = pneg %p281
        %p506 = scmp.lt.s32.totalorder %s33, 2
        %s507 = scalar_select %p506, %s33, 2
        %s508 = smul.addr %s507, 8
        %s509 = scalar_lea.vmem %s10, %s508
        %p510 = scmp.lt.s32.totalorder %s33, 2
        %s511 = scalar_select %p510, %s33, 2
        %s512 = smul.addr %s511, 8
        %s513 = scalar_lea.vmem %s10, %s512
        %v515 = vld [vmem:[%s424] sm:$0xff]
        %v516 = vld [vmem:[%s433] sm:$0xff]
        %v517 = vld [vmem:[%s442] sm:$0xff]
        %v518 = vld [vmem:[%s451] sm:$0xff]
        %v519 = vpack.c.bf16 %v515, %v515
        %v520 = vld [vmem:[#allocation11] sm:$0xf]
        %v521 = vld [vmem:[#allocation11 + $0x4] sm:$0xf]
        %v522 = vld [vmem:[#allocation11 + $0x8] sm:$0xf]
        %v523 = vld [vmem:[#allocation11 + $0xc] sm:$0xf]
        %v524 = vld [vmem:[#allocation11 + $0x10] sm:$0xf]
        %v525 = vld [vmem:[#allocation11 + $0x14] sm:$0xf]
        %v526 = vld [vmem:[#allocation11 + $0x18] sm:$0xf]
        %v527 = vld [vmem:[#allocation11 + $0x1c] sm:$0xf]
        %v528 = vld [vmem:[#allocation11 + $0x20] sm:$0xf]
        %v529 = vld [vmem:[#allocation11 + $0x24] sm:$0xf]
        %v530 = vld [vmem:[#allocation11 + $0x28] sm:$0xf]
        %v531 = vld [vmem:[#allocation11 + $0x2c] sm:$0xf]
        %v532 = vld [vmem:[#allocation11 + $0x30] sm:$0xf]
        %v533 = vld [vmem:[#allocation11 + $0x34] sm:$0xf]
        %v534 = vld [vmem:[#allocation11 + $0x38] sm:$0xf]
        %v535 = vld [vmem:[#allocation11 + $0x3c] sm:$0xf]
        %v536 = vld [vmem:[%s5] sm:$0x1]
        %v538 = vlaneseq
        %v539 = vshrl.u32 %v538, 7
        %v540 = vsub.s32 0, %v539
        %v541 = vrot.slane %v536, %v540
        %v559 = vunpack.c.l.b16 %v520
        %v560 = vunpack.c.l.b16 %v521
        %v561 = vunpack.c.l.b16 %v522
        %v562 = vunpack.c.l.b16 %v523
        %v563 = vunpack.c.l.b16 %v524
        %v564 = vunpack.c.l.b16 %v525
        %v565 = vunpack.c.l.b16 %v526
        %v566 = vunpack.c.l.b16 %v527
        %v567 = vunpack.c.l.b16 %v528
        %v568 = vunpack.c.l.b16 %v529
        %v569 = vunpack.c.l.b16 %v530
        %v570 = vunpack.c.l.b16 %v531
        %v571 = vunpack.c.l.b16 %v532
        %v572 = vunpack.c.l.b16 %v533
        %v573 = vunpack.c.l.b16 %v534
        %v574 = vunpack.c.l.b16 %v535
        %v575 = vpack.c.b16 %v560, %v559
        %v576 = vpack.c.b16 %v562, %v561
        %v577 = vpack.c.b16 %v564, %v563
        %v578 = vpack.c.b16 %v566, %v565
        %v579 = vpack.c.b16 %v568, %v567
        %v580 = vpack.c.b16 %v570, %v569
        %v581 = vpack.c.b16 %v572, %v571
        %v582 = vpack.c.b16 %v574, %v573
        %591 = vmatprep.subr.bf16.mxu0 0
        %592 = vmatpush1.bf16.xpose.msra.mxu0 %v575
        %593 = vmatprep.subr.bf16.mxu0 0
        %594 = vmatpush1.bf16.xpose.msra.mxu0 %v576
        %595 = vmatprep.subr.bf16.mxu0 0
        %596 = vmatpush1.bf16.xpose.msra.mxu0 %v577
        %597 = vmatprep.subr.bf16.mxu0 0
        %598 = vmatpush1.bf16.xpose.msra.mxu0 %v578
        %599 = vmatprep.subr.bf16.mxu0 0
        %600 = vmatpush1.bf16.xpose.msra.mxu0 %v579
        %601 = vmatprep.subr.bf16.mxu0 0
        %602 = vmatpush1.bf16.xpose.msra.mxu0 %v580
        %603 = vmatprep.subr.bf16.mxu0 0
        %604 = vmatpush1.bf16.xpose.msra.mxu0 %v581
        %605 = vmatprep.subr.bf16.mxu0 0
        %606 = vmatpush1.bf16.xpose.msra.mxu0 %v582
        %607 = vmatprep.subr.bf16.mxu0 0
        %608 = vmatpush1.bf16.xpose.msra.mxu0 0
        %609 = vmatprep.subr.bf16.mxu0 0
        %610 = vmatpush1.bf16.xpose.msra.mxu0 0
        %611 = vmatprep.subr.bf16.mxu0 0
        %612 = vmatpush1.bf16.xpose.msra.mxu0 0
        %613 = vmatprep.subr.bf16.mxu0 0
        %614 = vmatpush1.bf16.xpose.msra.mxu0 0
        %615 = vmatprep.subr.bf16.mxu0 0
        %616 = vmatpush1.bf16.xpose.msra.mxu0 0
        %617 = vmatprep.subr.bf16.mxu0 0
        %618 = vmatpush1.bf16.xpose.msra.mxu0 0
        %619 = vmatprep.subr.bf16.mxu0 0
        %620 = vmatpush1.bf16.xpose.msra.mxu0 0
        %621 = vmatprep.subr.bf16.mxu0 0
        %622 = vmatpush1.bf16.xpose.msra.mxu0 0
        %623 = vmatprep.mubr.bf16.mxu0 0
        %624 = vmatmul.mubr.bf16.gmra.mrb[0].mxu0 %v519
        %v625 = vpop.f32.mrb[0].mxu0
        %v626 = vadd.f32 %v541, %v625
        %v627 = vpop.f32.mrb[0].mxu0
        %v628 = vpop.f32.mrb[0].mxu0
        %v629 = vpop.f32.mrb[0].mxu0
        %630 = vdwg.mxu0
        %v631 = vpack.c.bf16 %v517, %v517
        %v632 = vld [vmem:[#allocation12] sm:$0xf]
        %v633 = vld [vmem:[#allocation12 + $0x4] sm:$0xf]
        %v634 = vld [vmem:[#allocation12 + $0x8] sm:$0xf]
        %v635 = vld [vmem:[#allocation12 + $0xc] sm:$0xf]
        %v636 = vld [vmem:[#allocation12 + $0x10] sm:$0xf]
        %v637 = vld [vmem:[#allocation12 + $0x14] sm:$0xf]
        %v638 = vld [vmem:[#allocation12 + $0x18] sm:$0xf]
        %v639 = vld [vmem:[#allocation12 + $0x1c] sm:$0xf]
        %v640 = vld [vmem:[#allocation12 + $0x20] sm:$0xf]
        %v641 = vld [vmem:[#allocation12 + $0x24] sm:$0xf]
        %v642 = vld [vmem:[#allocation12 + $0x28] sm:$0xf]
        %v643 = vld [vmem:[#allocation12 + $0x2c] sm:$0xf]
        %v644 = vld [vmem:[#allocation12 + $0x30] sm:$0xf]
        %v645 = vld [vmem:[#allocation12 + $0x34] sm:$0xf]
        %v646 = vld [vmem:[#allocation12 + $0x38] sm:$0xf]
        %v647 = vld [vmem:[#allocation12 + $0x3c] sm:$0xf]
        %v648 = vld [vmem:[%s7] sm:$0x1]
        %v650 = vlaneseq
        %v651 = vshrl.u32 %v650, 7
        %v652 = vsub.s32 0, %v651
        %v653 = vrot.slane %v648, %v652
        %v671 = vunpack.c.l.b16 %v632
        %v672 = vunpack.c.l.b16 %v633
        %v673 = vunpack.c.l.b16 %v634
        %v674 = vunpack.c.l.b16 %v635
        %v675 = vunpack.c.l.b16 %v636
        %v676 = vunpack.c.l.b16 %v637
        %v677 = vunpack.c.l.b16 %v638
        %v678 = vunpack.c.l.b16 %v639
        %v679 = vunpack.c.l.b16 %v640
        %v680 = vunpack.c.l.b16 %v641
        %v681 = vunpack.c.l.b16 %v642
        %v682 = vunpack.c.l.b16 %v643
        %v683 = vunpack.c.l.b16 %v644
        %v684 = vunpack.c.l.b16 %v645
        %v685 = vunpack.c.l.b16 %v646
        %v686 = vunpack.c.l.b16 %v647
        %v687 = vpack.c.b16 %v672, %v671
        %v688 = vpack.c.b16 %v674, %v673
        %v689 = vpack.c.b16 %v676, %v675
        %v690 = vpack.c.b16 %v678, %v677
        %v691 = vpack.c.b16 %v680, %v679
        %v692 = vpack.c.b16 %v682, %v681
        %v693 = vpack.c.b16 %v684, %v683
        %v694 = vpack.c.b16 %v686, %v685
        %703 = vmatprep.subr.bf16.mxu0 0
        %704 = vmatpush1.bf16.xpose.msra.mxu0 %v687
        %705 = vmatprep.subr.bf16.mxu0 0
        %706 = vmatpush1.bf16.xpose.msra.mxu0 %v688
        %707 = vmatprep.subr.bf16.mxu0 0
        %708 = vmatpush1.bf16.xpose.msra.mxu0 %v689
        %709 = vmatprep.subr.bf16.mxu0 0
        %710 = vmatpush1.bf16.xpose.msra.mxu0 %v690
        %711 = vmatprep.subr.bf16.mxu0 0
        %712 = vmatpush1.bf16.xpose.msra.mxu0 %v691
        %713 = vmatprep.subr.bf16.mxu0 0
        %714 = vmatpush1.bf16.xpose.msra.mxu0 %v692
        %715 = vmatprep.subr.bf16.mxu0 0
        %716 = vmatpush1.bf16.xpose.msra.mxu0 %v693
        %717 = vmatprep.subr.bf16.mxu0 0
        %718 = vmatpush1.bf16.xpose.msra.mxu0 %v694
        %719 = vmatprep.subr.bf16.mxu0 0
        %720 = vmatpush1.bf16.xpose.msra.mxu0 0
        %721 = vmatprep.subr.bf16.mxu0 0
        %722 = vmatpush1.bf16.xpose.msra.mxu0 0
        %723 = vmatprep.subr.bf16.mxu0 0
        %724 = vmatpush1.bf16.xpose.msra.mxu0 0
        %725 = vmatprep.subr.bf16.mxu0 0
        %726 = vmatpush1.bf16.xpose.msra.mxu0 0
        %727 = vmatprep.subr.bf16.mxu0 0
        %728 = vmatpush1.bf16.xpose.msra.mxu0 0
        %729 = vmatprep.subr.bf16.mxu0 0
        %730 = vmatpush1.bf16.xpose.msra.mxu0 0
        %731 = vmatprep.subr.bf16.mxu0 0
        %732 = vmatpush1.bf16.xpose.msra.mxu0 0
        %733 = vmatprep.subr.bf16.mxu0 0
        %734 = vmatpush1.bf16.xpose.msra.mxu0 0
        %735 = vmatprep.mubr.bf16.mxu0 0
        %736 = vmatmul.mubr.bf16.gmra.mrb[0].mxu0 %v631
        %v737 = vpop.f32.mrb[0].mxu0
        %v738 = vadd.f32 %v653, %v737
        %v739 = vpop.f32.mrb[0].mxu0
        %v740 = vpop.f32.mrb[0].mxu0
        %v741 = vpop.f32.mrb[0].mxu0
        %742 = vdwg.mxu0
        %v743 = vxor.u32 %v626, 2147483648
        %v744 = vmul.f32 %v743, 1.442695
        %v745 = vpow.pop %v744
        %v746 = vadd.f32 %v745, 1.0
        %v747 = vrcp.pop %v746
        %v748 = vmul.f32 1.0, %v747
        %v749 = vxor.u32 %v738, 2147483648
        %v750 = vmul.f32 %v749, 1.442695
        %v751 = vpow.pop %v750
        %v752 = vadd.f32 %v751, 1.0
        %v753 = vrcp.pop %v752
        %v754 = vmul.f32 1.0, %v753
        %v755 = vsub.f32 %v515, %v516
        %v756 = vmul.f32 %v748, %v755
        %v757 = vadd.f32 %v516, %v756
        %v758 = vsub.f32 %v517, %v518
        %v759 = vmul.f32 %v754, %v758
        %v760 = vadd.f32 %v518, %v759
        %v761 = vmul.f32 %v757, %v760
        %762 = vadd.xlane.f32.xlu0 %v761
        %v763 = vpop.xlane.xlu0 %762
        %v764 = vmul.f32 %v757, %v757
        %765 = vadd.xlane.f32.xlu0 %v764
        %v766 = vpop.xlane.xlu0 %765
        %v767 = vmax.f32 %v766, 1e-16
        %v768 = vmul.f32 %v760, %v760
        %769 = vadd.xlane.f32.xlu0 %v768
        %v770 = vpop.xlane.xlu0 %769
        %v771 = vmax.f32 %v770, 1e-16
        %v772 = vrsqrt.pop %v767
        %v773 = vmul.f32 %v763, %v772
        %v774 = vrsqrt.pop %v771
        %v775 = vmul.f32 %v773, %v774
        %s776 = sld [smem:[#allocation2]]
        %s777 = sld [smem:[#allocation3]]
        %v778 = vstv %s776
        %v779 = vmul.f32 %v778, %v775
        %v780 = vstv %s777
        %v781 = vadd.f32 %v779, %v780
        %v782 = vxor.u32 %v781, 2147483648
        %v783 = vmul.f32 %v782, 1.442695
        %v784 = vpow.pop %v783
        %v785 = vadd.f32 %v784, 1.0
        %v786 = vrcp.pop %v785
        %v787 = vmul.f32 1.0, %v786
        %vm788 = vcmask 7168
        %789 = vst.msk [vmem:[%s513] sm:$0xff] %vm788, %v787
        %p790 = scmp.lt.s32.totalorder %s33, 2
        %s791 = scalar_select %p790, %s33, 2
        %s792 = smul.addr %s791, 8
        %s793 = scalar_lea.vmem %s10, %s792
        // Predicated region
        $region85: #{tpu_custom_call.1} parent=59 // pred_check
          %p794 = pneg %p281
        $region86: #{tpu_custom_call.1} parent=59 // pred_check_branch
          %796 = sbr.rel (%p794) target = $region88
        $region87: #{tpu_custom_call.1} parent=59 // pred_region
          _
        $region88: #{tpu_custom_call.1} parent=59 // pred_fallthru
          _
      $region60: #{tpu_custom_call.1} parent=5 // pred_fallthru
        _
      %p797 = scmp.le.s32.totalorder 2, %s28
      // Predicated region
      $region89: #{tpu_custom_call.1} parent=5 // pred_check
        %p798 = pneg %p797
      $region90: #{tpu_custom_call.1} parent=5 // pred_check_branch
        %800 = sbr.rel (%p798) target = $region92
      $region91: #{tpu_custom_call.1} parent=5 // pred_region
        %s801 = ssub.s32 %s28, 2
        // Predicated region
        $region93: #{tpu_custom_call.1} parent=91 // pred_check
          %p802 = pneg %p287
        $region94: #{tpu_custom_call.1} parent=91 // pred_check_branch
          %804 = sbr.rel (%p802) target = $region96
        $region95: #{tpu_custom_call.1} parent=91 // pred_region
          %p805 = scmp.lt.s32.totalorder %s34, 2
          %s806 = scalar_select %p805, %s34, 2
          %s807 = smul.addr %s806, 8
          %s808 = scalar_lea.vmem %s10, %s807
        $region96: #{tpu_custom_call.1} parent=91 // pred_fallthru
          _
      $region92: #{tpu_custom_call.1} parent=5 // pred_fallthru
        _
    $region6: #{tpu_custom_call.1} parent=1 // loop_footer
      %s32 = sadd.s32 1, %s28
    $region7: #{tpu_custom_call.1} parent=1 // loop_footer_branch
      %27 = sbr.rel target = $region3
    $region8: #{tpu_custom_call.1} parent=1 // loop_exit
      _
    %809 = vsyncpa [#allocation5], 1
    %s810 = scalar_lea.sflag [#allocation5], 1
    %811 = vsyncpa %s810, 1
    %812 = vsyncpa [#allocation7], 1
    %s813 = scalar_lea.sflag [#allocation7], 1
    %814 = vsyncpa %s813, 1
    %815 = vsyncpa [#allocation10], 1
    %s816 = scalar_lea.sflag [#allocation10], 1
    %817 = vsyncpa %s816, 1
    %818 = vsyncpa [#allocation13], 1

</llo_original>
